<compile_context>
chip_gen: v5e
topology: v5e:2x2
jax: 0.10.0
libtpu: 0.0.40
codegen_flags: <defaults>
</compile_context>

<pallas_src>
import functools

import jax
import jax.numpy as jnp
from jax import lax
from jax.experimental import pallas as pl
from jax.experimental.pallas import tpu as pltpu

_LANES = 128


def _max_tile_rows() -> int:
    """Rows per (rows, 128) tile.  f32 tile bytes = rows * 512."""
    try:
        kind = jax.devices()[0].device_kind.lower()
    except Exception:  # pragma: no cover - defensive; default is fine anywhere
        kind = ""
    if "v7" in kind:
        # 4 MiB per f32 buffer: amortizes ~0.35us per-step overhead at 3.2 TB/s.
        return 8192
    # 2 MiB per f32 buffer already sits on the HBM roofline on v5e / v6e.
    return 4096


def _partial_tile_sum(tiles, labels, tile_rows, valid_elems):
    """sum over this tile of sum_k (tiles[k] - labels[k])^2, masked to the
    first `valid_elems` elements (row-major).  Returns an (8,128) or (1,128)
    f32 partial (pure vreg adds when tile_rows % 8 == 0)."""
    sq = None
    for x, label in zip(tiles, labels):
        xf = x.astype(jnp.float32)
        # fake_label == 0.0 path: skip the subtract entirely (VPU op saved).
        d = xf if float(label) == 0.0 else xf - jnp.float32(label)
        s = d * d
        sq = s if sq is None else sq + s
    if valid_elems < tile_rows * _LANES:
        row = lax.broadcasted_iota(jnp.int32, (tile_rows, _LANES), 0)
        lane = lax.broadcasted_iota(jnp.int32, (tile_rows, _LANES), 1)
        sq = jnp.where(row * _LANES + lane < valid_elems, sq, 0.0)
    if tile_rows % 8 == 0:
        # Layout-free split of the sublane axis; axis-0 sum = plain vreg adds.
        return sq.reshape(tile_rows // 8, 8, _LANES).sum(axis=0)
    return sq.sum(axis=0, keepdims=True)


def _sq_err_kernel(*refs, labels, scale, tile_rows, num_blocks, valid_last):
    """Accumulates sum_k sum((x_k - label_k)^2) over the row-tiled grid.

    refs = (*x_refs, o_ref, acc_ref)
      x_refs: (tile_rows, 128) tiles, native dtype (cast in-kernel).
      o_ref:  (1, 1) f32 SMEM output, written once at the last grid step.
      acc_ref: (acc_rows, 128) f32 VMEM vector accumulator.
    """
    n_in = len(labels)
    x_refs = refs[:n_in]
    o_ref = refs[n_in]
    acc_ref = refs[n_in + 1]
    i = pl.program_id(0)

    @pl.when(i == 0)
    def _():
        acc_ref[...] = jnp.zeros_like(acc_ref)

    tiles = [r[...] for r in x_refs]
    tile_elems = tile_rows * _LANES

    if num_blocks == 1:
        acc_ref[...] += _partial_tile_sum(tiles, labels, tile_rows, valid_last)
    elif valid_last == tile_elems:
        acc_ref[...] += _partial_tile_sum(tiles, labels, tile_rows, tile_elems)
    else:
        # Only the last row-block is ragged; keep the bulk path mask-free.
        @pl.when(i < num_blocks - 1)
        def _():
            acc_ref[...] += _partial_tile_sum(
                tiles, labels, tile_rows, tile_elems)

        @pl.when(i == num_blocks - 1)
        def _():
            acc_ref[...] += _partial_tile_sum(
                tiles, labels, tile_rows, valid_last)

    @pl.when(i == num_blocks - 1)
    def _():
        # Single cross-lane/sublane reduce; 1/n (and 0.5) folded into `scale`.
        o_ref[0, 0] = jnp.sum(acc_ref[...]) * jnp.float32(scale)


def _to_slab(x):
    """Flatten to a lane-dense (rows, 128) slab; copy-free when size % 128 == 0."""
    n = int(x.size)
    assert n > 0, "empty input to LSLoss"
    flat = jnp.ravel(x)
    rem = n % _LANES
    if rem != 0:
        # Pads with zeros; the pad elements are excluded exactly by the
        # in-kernel element-count mask (no label-representability bias).
        flat = jnp.concatenate(
            [flat, jnp.zeros((_LANES - rem,), dtype=flat.dtype)])
    rows = flat.size // _LANES
    return flat.reshape(rows, _LANES), n, rows


def _sum_sq_err(slabs, labels, n, rows, scale):
    """scale * sum_k sum((slab_k - label_k)^2) over the first n elements."""
    max_rows = _max_tile_rows()
    if rows <= max_rows:
        tile_rows = rows          # single block; full-dim block shape is legal
        num_blocks = 1
    else:
        tile_rows = max_rows      # multiple of 8; last block may be ragged
        num_blocks = -(-rows // tile_rows)
    tile_elems = tile_rows * _LANES
    valid_last = n - (num_blocks - 1) * tile_elems
    acc_rows = 8 if tile_rows % 8 == 0 else 1

    kernel = functools.partial(
        _sq_err_kernel,
        labels=tuple(float(l) for l in labels),
        scale=float(scale),
        tile_rows=tile_rows,
        num_blocks=num_blocks,
        valid_last=valid_last,
    )

    in_specs = [pl.BlockSpec((tile_rows, _LANES), lambda i: (i, 0))
                for _ in slabs]

    total = pl.pallas_call(
        kernel,
        out_shape=jax.ShapeDtypeStruct((1, 1), jnp.float32),
        grid=(num_blocks,),
        in_specs=in_specs,
        out_specs=pl.BlockSpec(memory_space=pltpu.MemorySpace.SMEM),
        scratch_shapes=[pltpu.VMEM((acc_rows, _LANES), jnp.float32)],
        compiler_params=pltpu.CompilerParams(
            dimension_semantics=("arbitrary",)),
    )(*slabs)
    return total[0, 0]


def _mean_sq_err_to_label(x, label: float):
    slab, n, rows = _to_slab(x)
    return _sum_sq_err([slab], [label], n, rows, 1.0 / float(n))


def ls_loss(dis_real, dis_gen, step: str = "discriminator",
            valid_label: float = 1.0, fake_label: float = 0.0):
    """Pallas implementation of LSLoss.forward."""
    if step == "discriminator":
        if int(dis_real.size) == int(dis_gen.size):
            # Fused: one kernel, two inputs sharing the grid; 0.5/n folded in.
            slab_r, n, rows = _to_slab(dis_real)
            slab_g, _, _ = _to_slab(dis_gen)
            return _sum_sq_err([slab_r, slab_g], [valid_label, fake_label],
                               n, rows, 0.5 / float(n))
        # Fallback for mismatched sizes: two reductions, combined in wrapper.
        return 0.5 * (_mean_sq_err_to_label(dis_real, valid_label)
                      + _mean_sq_err_to_label(dis_gen, fake_label))
    elif step == "generator":
        return _mean_sq_err_to_label(dis_gen, valid_label)
    else:
        raise ValueError(f"unknown step: {step!r}")


def _reference(dis_real, dis_gen, step, valid=1.0, fake=0.0):
    dis_real = dis_real.astype(jnp.float32)
    dis_gen = dis_gen.astype(jnp.float32)
    if step == "discriminator":
        return 0.5 * (jnp.mean((dis_real - valid) ** 2)
                      + jnp.mean((dis_gen - fake) ** 2))
    return jnp.mean((dis_gen - valid) ** 2)


if __name__ == "__main__":
    key = jax.random.PRNGKey(0)
    k1, k2, k3, k4 = jax.random.split(key, 4)

    # Discriminator outputs for a small batch: (batch=2, channels=4, length=16)
    B, C, L = 2, 4, 16
    dis_real = 0.9 + 0.1 * jax.random.normal(k1, (B, C, L), dtype=jnp.float32)
    dis_gen = 0.1 + 0.1 * jax.random.normal(k2, (B, C, L), dtype=jnp.float32)

    d_loss = jax.block_until_ready(ls_loss(dis_real, dis_gen, step="discriminator"))
    g_loss = jax.block_until_ready(ls_loss(dis_real, dis_gen, step="generator"))
    d_ref = jax.block_until_ready(_reference(dis_real, dis_gen, "discriminator"))
    g_ref = jax.block_until_ready(_reference(dis_real, dis_gen, "generator"))
    assert jnp.allclose(d_loss, d_ref, rtol=1e-5, atol=1e-6), (d_loss, d_ref)
    assert jnp.allclose(g_loss, g_ref, rtol=1e-5, atol=1e-6), (g_loss, g_ref)

    # Ragged (size % 128 != 0) path: exercises the in-kernel tail mask.
    rr = 0.9 + 0.1 * jax.random.normal(k3, (2, 4, 25), dtype=jnp.float32)
    gg = 0.1 + 0.1 * jax.random.normal(k4, (2, 4, 25), dtype=jnp.float32)
    d2 = jax.block_until_ready(ls_loss(rr, gg, step="discriminator"))
    d2_ref = jax.block_until_ready(_reference(rr, gg, "discriminator"))
    assert jnp.allclose(d2, d2_ref, rtol=1e-5, atol=1e-6), (d2, d2_ref)

    print("KERNEL_OK")
</pallas_src>

<mosaic_0001>
module attributes {stable_mosaic.version = 11 : i64} {
  func.func @_sq_err_kernel(%arg0: i32, %arg1: memref<1x128xf32, #tpu.memory_space<vmem>>, %arg2: memref<1x128xf32, #tpu.memory_space<vmem>>, %arg3: memref<1x1xf32, #tpu.memory_space<smem>>, %arg4: memref<1x128xf32, #tpu.memory_space<vmem>>) attributes {dimension_semantics = [#tpu.dimension_semantics<arbitrary>], iteration_bounds = array<i64: 1>, scalar_prefetch = 0 : i64, scratch_operands = 1 : i64, tpu.core_type = #tpu.core_type<tc>, window_params = [{transform_indices = @transform_0, window_bounds = array<i64: 1, 128>}, {transform_indices = @transform_1, window_bounds = array<i64: 1, 128>}, {transform_indices = @transform_2, window_bounds = array<i64: 1, 1>}]} {
    %c0_i32 = arith.constant 0 : i32
    %0 = arith.cmpi eq, %arg0, %c0_i32 : i32
    %1 = arith.extui %0 : i1 to i32
    %c0_i32_0 = arith.constant 0 : i32
    %2 = arith.cmpi ne, %1, %c0_i32_0 : i32
    scf.if %2 {
      %cst_11 = arith.constant 0.000000e+00 : f32
      %18 = vector.broadcast %cst_11 : f32 to vector<1x128xf32>
      %c0_12 = arith.constant 0 : index
      %c0_13 = arith.constant 0 : index
      %19 = vector.load %arg4[%c0_12, %c0_13] : memref<1x128xf32, #tpu.memory_space<vmem>>, vector<1x128xf32>
      tpu.vector_store %arg4[%c0_12, %c0_13], %18 {strides = array<i32>} : memref<1x128xf32, #tpu.memory_space<vmem>>, vector<1x128xf32>,
    } else {
    }
    %c0 = arith.constant 0 : index
    %c0_1 = arith.constant 0 : index
    %3 = vector.load %arg1[%c0, %c0_1] : memref<1x128xf32, #tpu.memory_space<vmem>>, vector<1x128xf32>
    %c0_2 = arith.constant 0 : index
    %c0_3 = arith.constant 0 : index
    %4 = vector.load %arg2[%c0_2, %c0_3] : memref<1x128xf32, #tpu.memory_space<vmem>>, vector<1x128xf32>
    %c0_4 = arith.constant 0 : index
    %c0_5 = arith.constant 0 : index
    %5 = vector.load %arg4[%c0_4, %c0_5] : memref<1x128xf32, #tpu.memory_space<vmem>>, vector<1x128xf32>
    %cst = arith.constant 1.000000e+00 : f32
    %6 = vector.broadcast %cst : f32 to vector<1x128xf32>
    %7 = arith.subf %3, %6 : vector<1x128xf32>
    %8 = arith.mulf %7, %7 : vector<1x128xf32>
    %9 = arith.mulf %4, %4 : vector<1x128xf32>
    %10 = arith.addf %8, %9 : vector<1x128xf32>
    %cst_6 = arith.constant dense<0.000000e+00> : vector<128xf32>
    %11 = vector.multi_reduction <add>, %10, %cst_6 [0] : vector<1x128xf32> to vector<128xf32>
    %12 = vector.shape_cast %11 : vector<128xf32> to vector<1x128xf32>
    %13 = arith.addf %5, %12 : vector<1x128xf32>
    %c0_7 = arith.constant 0 : index
    %c0_8 = arith.constant 0 : index
    %14 = vector.load %arg4[%c0_7, %c0_8] : memref<1x128xf32, #tpu.memory_space<vmem>>, vector<1x128xf32>
    tpu.vector_store %arg4[%c0_7, %c0_8], %13 {strides = array<i32>} : memref<1x128xf32, #tpu.memory_space<vmem>>, vector<1x128xf32>,
    %c0_i32_9 = arith.constant 0 : i32
    %15 = arith.cmpi eq, %arg0, %c0_i32_9 : i32
    %16 = arith.extui %15 : i1 to i32
    %c0_i32_10 = arith.constant 0 : i32
    %17 = arith.cmpi ne, %16, %c0_i32_10 : i32
    scf.if %17 {
      %c0_11 = arith.constant 0 : index
      %c0_12 = arith.constant 0 : index
      %18 = vector.load %arg4[%c0_11, %c0_12] : memref<1x128xf32, #tpu.memory_space<vmem>>, vector<1x128xf32>
      %19 = vector.shape_cast %18 : vector<1x128xf32> to vector<1x1x128xf32>
      %cst_13 = arith.constant dense<0.000000e+00> : vector<1xf32>
      %20 = vector.multi_reduction <add>, %19, %cst_13 [1, 2] : vector<1x1x128xf32> to vector<1xf32>
      %21 = vector.shape_cast %20 : vector<1xf32> to vector<1x1x1xf32>
      %22 = vector.extract %21[0, 0, 0] : f32 from vector<1x1x1xf32>
      %cst_14 = arith.constant 3.906250e-03 : f32
      %23 = arith.mulf %22, %cst_14 : f32
      %c0_15 = arith.constant 0 : index
      %c0_16 = arith.constant 0 : index
      %24 = memref.load %arg3[%c0_15, %c0_16] : memref<1x1xf32, #tpu.memory_space<smem>>
      memref.store %23, %arg3[%c0_15, %c0_16] : memref<1x1xf32, #tpu.memory_space<smem>>
    } else {
    }
    return
  }
  func.func @transform_0(%arg0: i32) -> (i32, i32) {
    %c0_i32 = arith.constant 0 : i32
    %c0_i32_0 = arith.constant 0 : i32
    return %arg0, %c0_i32 : i32, i32
  }
  func.func @transform_1(%arg0: i32) -> (i32, i32) {
    %c0_i32 = arith.constant 0 : i32
    %c0_i32_0 = arith.constant 0 : i32
    return %arg0, %c0_i32 : i32, i32
  }
  func.func @transform_2(%arg0: i32) -> (i32, i32) {
    %c0_i32 = arith.constant 0 : i32
    %c0_i32_0 = arith.constant 0 : i32
    %c0_i32_1 = arith.constant 0 : i32
    return %c0_i32, %c0_i32_0 : i32, i32
  }
}

</mosaic_0001>

<llo_original>
// kernel: tpu_custom_call.1
$region0: #{tpu_custom_call.1}
  #allocation0 [shape = 'u32[]', space=smem, size = 0x4, offset = 0x4, fixed_abs, tag = 'smem constant byte address 0x4 - core index']
  #allocation1 [shape = 'u32[72,128]{1,0:T(1,128)}', space=vmem, size = 0x9000, scoped, tag = 'internal scratch']
  #allocation2 [shape = 'f32[1,128]{1,0:T(1,128)}', space=vmem, size = 0x200, scoped, tag = 'scratch operand']
  %s0 = inlined_call_operand.hbm [shape: f32[1,128], index: 0, kind: input, shape index: {}]
  %s1 = inlined_call_operand.hbm [shape: f32[1,128], index: 1, kind: input, shape index: {}]
  %s2 = inlined_call_operand.hbm [shape: f32[1,1], index: 2, kind: output, shape index: {}]
  %s3 = sld [smem:[#allocation0]]
  $region34: #{tpu_custom_call.1} parent=0
    _
  %s5 = ssub.s32 1, %s3
  %s6 = scalar_select 0, %s5, %s3
  $region1: #{tpu_custom_call.1} parent=0
    #allocation3 [shape = 'u8[512]{0}', space=vmem, size = 0x400, scoped, tag = 'input window, operand 0, single buffered']
    #allocation4 [shape = 's32[1]{0}', space=sflag, size = 0x4, scoped, tag = 'scoped memory for tpu_custom_call.1']
    #allocation5 [shape = 's32[1]{0}', space=sflag, size = 0x4, scoped, tag = 'scoped memory for tpu_custom_call.1']
    #allocation6 [shape = 'u8[512]{0}', space=vmem, size = 0x400, scoped, tag = 'input window, operand 1, single buffered']
    #allocation7 [shape = 's32[1]{0}', space=sflag, size = 0x4, scoped, tag = 'scoped memory for tpu_custom_call.1']
    #allocation8 [shape = 'u8[512]{0}', space=smem, size = 0x200, scoped, tag = 'output window, operand 0, single buffered']
    %7 = vsyncpa [#allocation4], 0
    %8 = vsyncpa [#allocation7], 0
    %9 = vsyncpa [#allocation5], 0
    // Predicated region
    $region2: #{tpu_custom_call.1} parent=1 // pred_check
      _
    $region3: #{tpu_custom_call.1} parent=1 // pred_check_branch
      %11 = sbr.rel (0) target = $region5
    $region4: #{tpu_custom_call.1} parent=1 // pred_region
      %13 = vsyncadd [#allocation4], 0
      %s15 = sshll.u32 %s0, 4
      %s16 = int_to_ptr.hbm [resolvable:$true] %s15
      %s17 = sshll.u32 [#allocation3], 4
      %s18 = int_to_ptr.vmem [resolvable:$true] %s17
      %20 = dma.hbm_to_vmem [thread:$0]  %s16, 16, %s18, [#allocation4]
    $region5: #{tpu_custom_call.1} parent=1 // pred_fallthru
      _
    // Predicated region
    $region6: #{tpu_custom_call.1} parent=1 // pred_check
      _
    $region7: #{tpu_custom_call.1} parent=1 // pred_check_branch
      %22 = sbr.rel (0) target = $region9
    $region8: #{tpu_custom_call.1} parent=1 // pred_region
      %24 = vsyncadd [#allocation7], 0
      %s26 = sshll.u32 %s1, 4
      %s27 = int_to_ptr.hbm [resolvable:$true] %s26
      %s28 = sshll.u32 [#allocation6], 4
      %s29 = int_to_ptr.vmem [resolvable:$true] %s28
      %31 = dma.hbm_to_vmem [thread:$0]  %s27, 16, %s29, [#allocation7]
    $region9: #{tpu_custom_call.1} parent=1 // pred_fallthru
      _
    // Predicated region
    $region10: #{tpu_custom_call.1} parent=1 // pred_check
      _
    $region11: #{tpu_custom_call.1} parent=1 // pred_check_branch
      %33 = sbr.rel (0) target = $region13
    $region12: #{tpu_custom_call.1} parent=1 // pred_region
      %35 = dma.done [#allocation4], 16
    $region13: #{tpu_custom_call.1} parent=1 // pred_fallthru
      _
    // Predicated region
    $region14: #{tpu_custom_call.1} parent=1 // pred_check
      _
    $region15: #{tpu_custom_call.1} parent=1 // pred_check_branch
      %37 = sbr.rel (0) target = $region17
    $region16: #{tpu_custom_call.1} parent=1 // pred_region
      %39 = dma.done [#allocation7], 16
    $region17: #{tpu_custom_call.1} parent=1 // pred_fallthru
      _
    %p40 = scmp.eq.s32.totalorder 0, 0
    // Predicated region
    $region18: #{tpu_custom_call.1} parent=1 // pred_check
      %p41 = pneg %p40
    $region19: #{tpu_custom_call.1} parent=1 // pred_check_branch
      %43 = sbr.rel (%p41) target = $region21
    $region20: #{tpu_custom_call.1} parent=1 // pred_region
      %44 = vst [vmem:[#allocation2] sm:$0x1] 0.0
    $region21: #{tpu_custom_call.1} parent=1 // pred_fallthru
      _
    %v45 = vld [vmem:[#allocation3] sm:$0x1]
    %v46 = vld [vmem:[#allocation6] sm:$0x1]
    %v47 = vld [vmem:[#allocation2] sm:$0x1]
    %v48 = vsub.f32 %v45, 1.0
    %v49 = vmul.f32 %v48, %v48
    %v50 = vmul.f32 %v46, %v46
    %v51 = vadd.f32 %v49, %v50
    %v52 = vadd.f32 %v51, 0.0
    %v53 = vadd.f32 %v47, %v52
    %54 = vst [vmem:[#allocation2] sm:$0x1] %v53
    // Predicated region
    $region22: #{tpu_custom_call.1} parent=1 // pred_check
      %p55 = pneg %p40
    $region23: #{tpu_custom_call.1} parent=1 // pred_check_branch
      %57 = sbr.rel (%p55) target = $region25
    $region24: #{tpu_custom_call.1} parent=1 // pred_region
      %v58 = vld [vmem:[#allocation2] sm:$0x1]
      %vm59 = vcmask 1040384
      %v60 = vsel %vm59, %v58, 0.0
      %61 = vadd.xlane.f32.xlu0 %v60
      %v62 = vpop.xlane.xlu0 %61
      %v63 = vrot.slane %v62, 4
      %v64 = vadd.f32 %v62, %v63
      %v65 = vrot.slane %v64, 2
      %v66 = vadd.f32 %v64, %v65
      %v67 = vrot.slane %v66, 1
      %v68 = vadd.f32 %v66, %v67
      %s69 = vtos %v68
      %s70 = smul.f32 %s69, 0.00390625
      %s71 = scalar_lea.smem [#allocation8], 0
      %72 = sst [smem:[%s71]] %s70
    $region25: #{tpu_custom_call.1} parent=1 // pred_fallthru
      _
    // Predicated region
    $region26: #{tpu_custom_call.1} parent=1 // pred_check
      _
    $region27: #{tpu_custom_call.1} parent=1 // pred_check_branch
      %74 = sbr.rel (0) target = $region29
    $region28: #{tpu_custom_call.1} parent=1 // pred_region
      %76 = vsyncadd [#allocation5], 0
      %s78 = sshll.u32 %s2, 4
      %s79 = int_to_ptr.hbm [resolvable:$true] %s78
      %81 = dma.smem_to_hbm [#allocation8], 16, %s79, [#allocation5]
    $region29: #{tpu_custom_call.1} parent=1 // pred_fallthru
      _
    // Predicated region
    $region30: #{tpu_custom_call.1} parent=1 // pred_check
      _
    $region31: #{tpu_custom_call.1} parent=1 // pred_check_branch
      %83 = sbr.rel (0) target = $region33
    $region32: #{tpu_custom_call.1} parent=1 // pred_region
      %85 = dma.done [#allocation5], 16
    $region33: #{tpu_custom_call.1} parent=1 // pred_fallthru
      _
    %86 = sfence
    %87 = vsyncpa [#allocation4], 1
    %88 = vsyncpa [#allocation7], 1
    %89 = vsyncpa [#allocation5], 1

</llo_original>
